<compile_context>
chip_gen: v6e
topology: v6e:2x2x1
jax: 0.10.0
libtpu: 0.0.40
codegen_flags: <defaults>
</compile_context>

<pallas_src>
import numpy as np

import jax
import jax.numpy as jnp
from jax.experimental import pallas as pl
from jax.experimental.pallas import tpu as pltpu


IN_DIM = 7          # pose vector length (quaternion 4 + translation 3)
IN_DIM_AUG = 8      # padded to sublane multiple; 8th column = 1.0 (bias slot)
HID_DIM = 256
OUT_DIM = 128


# ----------------------------------------------------------------------------
# Pallas kernel: fused Linear(7,256)+ReLU -> Linear(256,128)+ReLU on one tile
# ----------------------------------------------------------------------------
def _pose_mlp_kernel(x_ref, w1_ref, w2_ref, b2_ref, o_ref):
    """x_ref:  (TM, 8)   f32  (col 7 == 1.0, the bias slot)
       w1_ref: (8, 256)  bf16 (row 7 == b1)
       w2_ref: (256,128) bf16
       b2_ref: (1, 128)  f32
       o_ref:  (TM, 128) f32"""
    x = x_ref[...].astype(jnp.bfloat16)
    # Layer 1: bias folded into the matmul (row 7 of W1 * ones column of x).
    h = jnp.dot(x, w1_ref[...], preferred_element_type=jnp.float32)
    h = jnp.maximum(h, 0.0)                                   # ReLU in f32
    # Layer 2: bf16 operands, f32 accumulate; bias + ReLU on the VPU in f32.
    y = jnp.dot(h.astype(jnp.bfloat16), w2_ref[...],
                preferred_element_type=jnp.float32)
    o_ref[...] = jnp.maximum(y + b2_ref[...], 0.0)


# ----------------------------------------------------------------------------
# Host-side wrapper
# ----------------------------------------------------------------------------
def _cdiv(a, b):
    return -(-a // b)


def _round_up(x, m):
    return ((x + m - 1) // m) * m


def pose_extractor_forward(x, params, max_tile_m=2048, min_split_rows=512):
    """x: (..., 7) float32 -> (..., 128) float32."""
    lead_shape = x.shape[:-1]
    M = int(np.prod(lead_shape)) if lead_shape else 1

    x2 = jnp.asarray(x, jnp.float32).reshape(M, IN_DIM)

    # --- pick row tiling ------------------------------------------------
    # Enough steps to respect max_tile_m; at least 2 (even) steps when M is
    # large so both v7x TensorCores get work; tile rounded up to 8 sublanes
    # with minimal tail padding.
    steps = max(1, _cdiv(M, max_tile_m))
    if M >= min_split_rows:
        steps = max(steps, 2)
    if steps > 1 and steps % 2 == 1:
        steps += 1
    tile_m = _round_up(_cdiv(M, steps), 8)
    m_pad = tile_m * steps

    # --- single host pad: rows + the 7->8 bias column in one op ----------
    # The pad constant 1.0 supplies the bias-slot column for real rows; the
    # extra padded rows are garbage but are sliced off after the kernel.
    x_aug = jnp.pad(x2, ((0, m_pad - M), (0, 1)), constant_values=1.0)

    # --- weight prep (one-time): fold b1 into W1, cast to bf16 -----------
    w1 = params["w1"].astype(jnp.float32)                     # (7, 256)
    b1 = params["b1"].astype(jnp.float32)                     # (256,)
    w1_aug = jnp.concatenate([w1, b1[None, :]], axis=0)       # (8, 256)
    w1_aug = w1_aug.astype(jnp.bfloat16)
    w2 = params["w2"].astype(jnp.bfloat16)                    # (256, 128)
    b2 = params["b2"].astype(jnp.float32).reshape(1, OUT_DIM)  # (1, 128)

    grid = (steps,)

    out = pl.pallas_call(
        _pose_mlp_kernel,
        out_shape=jax.ShapeDtypeStruct((m_pad, OUT_DIM), jnp.float32),
        grid=grid,
        in_specs=[
            pl.BlockSpec((tile_m, IN_DIM_AUG), lambda i: (i, 0)),
            # Weights/biases: constant block index -> stay resident in VMEM.
            pl.BlockSpec((IN_DIM_AUG, HID_DIM), lambda i: (0, 0)),
            pl.BlockSpec((HID_DIM, OUT_DIM), lambda i: (0, 0)),
            pl.BlockSpec((1, OUT_DIM), lambda i: (0, 0)),
        ],
        out_specs=pl.BlockSpec((tile_m, OUT_DIM), lambda i: (i, 0)),
        compiler_params=pltpu.CompilerParams(
            dimension_semantics=("parallel",)),
    )(x_aug, w1_aug, w2, b2)

    out = out[:M]
    return out.reshape(lead_shape + (OUT_DIM,))


# ----------------------------------------------------------------------------
# Deterministic parameter construction (synthetic — no checkpoint)
# ----------------------------------------------------------------------------
def make_params(key):
    k1, k2, k3, k4 = jax.random.split(key, 4)
    # Stored as (in, out); PyTorch nn.Linear stores (out, in) — transposed here.
    return {
        "w1": 0.1 * jax.random.normal(k1, (IN_DIM, HID_DIM), jnp.float32),
        "b1": 0.01 * jax.random.normal(k2, (HID_DIM,), jnp.float32),
        "w2": 0.1 * jax.random.normal(k3, (HID_DIM, OUT_DIM), jnp.float32),
        "b2": 0.01 * jax.random.normal(k4, (OUT_DIM,), jnp.float32),
    }


# ----------------------------------------------------------------------------
# Pure-JAX references for verification
# ----------------------------------------------------------------------------
def reference_forward_f32(x, params):
    h = jax.nn.relu(x @ params["w1"] + params["b1"])
    return jax.nn.relu(h @ params["w2"] + params["b2"])


def reference_forward_bf16(x, params):
    # Mimics the kernel's numerics: bf16 MXU operands, f32 accumulation,
    # bias b1 folded into a bf16 W1 row.
    w1_aug = jnp.concatenate(
        [params["w1"], params["b1"][None, :]], axis=0).astype(jnp.bfloat16)
    ones = jnp.ones(x.shape[:-1] + (1,), jnp.float32)
    x_aug = jnp.concatenate([x, ones], axis=-1).astype(jnp.bfloat16)
    h = jnp.maximum(
        jnp.dot(x_aug, w1_aug, preferred_element_type=jnp.float32), 0.0)
    y = jnp.dot(h.astype(jnp.bfloat16), params["w2"].astype(jnp.bfloat16),
                preferred_element_type=jnp.float32)
    return jnp.maximum(y + params["b2"], 0.0)


if __name__ == "__main__":
    B, P = 2, 16  # batch of 2, 16 parts, 7-dim pose each

    key = jax.random.PRNGKey(0)
    kx, kp = jax.random.split(key)
    x = jax.random.normal(kx, (B, P, IN_DIM), jnp.float32)
    params = make_params(kp)

    out = jax.block_until_ready(pose_extractor_forward(x, params))
    ref32 = jax.block_until_ready(reference_forward_f32(x, params))
    ref16 = jax.block_until_ready(reference_forward_bf16(x, params))

    assert out.shape == (B, P, OUT_DIM), out.shape
    # Semantic check against the pure-f32 module (loose: bf16 MXU operands).
    assert jnp.allclose(out, ref32, atol=2e-2, rtol=2e-2)
    # Tight check against a reference with matching bf16-matmul numerics.
    assert jnp.allclose(out, ref16, atol=1e-3, rtol=1e-3)

    print("KERNEL_OK")
</pallas_src>

<mosaic_0001>
module attributes {stable_mosaic.version = 11 : i64} {
  func.func @_pose_mlp_kernel(%arg0: i32, %arg1: memref<32x8xf32, #tpu.memory_space<vmem>>, %arg2: memref<8x256xbf16, #tpu.memory_space<vmem>>, %arg3: memref<256x128xbf16, #tpu.memory_space<vmem>>, %arg4: memref<1x128xf32, #tpu.memory_space<vmem>>, %arg5: memref<32x128xf32, #tpu.memory_space<vmem>>) attributes {dimension_semantics = [#tpu.dimension_semantics<parallel>], iteration_bounds = array<i64: 1>, scalar_prefetch = 0 : i64, scratch_operands = 0 : i64, tpu.core_type = #tpu.core_type<tc>, window_params = [{transform_indices = @transform_0, window_bounds = array<i64: 32, 8>}, {pipeline_mode = #tpu.pipeline_mode<synchronous>, transform_indices = @transform_1, window_bounds = array<i64: 8, 256>}, {pipeline_mode = #tpu.pipeline_mode<synchronous>, transform_indices = @transform_2, window_bounds = array<i64: 256, 128>}, {pipeline_mode = #tpu.pipeline_mode<synchronous>, transform_indices = @transform_3, window_bounds = array<i64: 1, 128>}, {transform_indices = @transform_4, window_bounds = array<i64: 32, 128>}]} {
    %c0 = arith.constant 0 : index
    %c0_0 = arith.constant 0 : index
    %0 = vector.load %arg1[%c0, %c0_0] : memref<32x8xf32, #tpu.memory_space<vmem>>, vector<32x8xf32>
    %1 = arith.truncf %0 : vector<32x8xf32> to vector<32x8xbf16>
    %c0_1 = arith.constant 0 : index
    %c0_2 = arith.constant 0 : index
    %2 = vector.load %arg2[%c0_1, %c0_2] : memref<8x256xbf16, #tpu.memory_space<vmem>>, vector<8x256xbf16>
    %cst = arith.constant dense<0.000000e+00> : vector<32x256xf32>
    %3 = tpu.matmul %1, %2, %cst {dimension_numbers = #tpu.dot_dimension_numbers<[1], [0], [0], [1], [0, 0, 1, 1], [], []>} : vector<32x8xbf16>, vector<8x256xbf16>, vector<32x256xf32> -> vector<32x256xf32>
    %cst_3 = arith.constant 0.000000e+00 : f32
    %4 = vector.broadcast %cst_3 : f32 to vector<32x256xf32>
    %5 = arith.maximumf %3, %4 : vector<32x256xf32>
    %6 = arith.truncf %5 : vector<32x256xf32> to vector<32x256xbf16>
    %c0_4 = arith.constant 0 : index
    %c0_5 = arith.constant 0 : index
    %7 = vector.load %arg3[%c0_4, %c0_5] : memref<256x128xbf16, #tpu.memory_space<vmem>>, vector<256x128xbf16>
    %cst_6 = arith.constant dense<0.000000e+00> : vector<32x128xf32>
    %8 = tpu.matmul %6, %7, %cst_6 {dimension_numbers = #tpu.dot_dimension_numbers<[1], [0], [0], [1], [0, 0, 1, 1], [], []>} : vector<32x256xbf16>, vector<256x128xbf16>, vector<32x128xf32> -> vector<32x128xf32>
    %c0_7 = arith.constant 0 : index
    %c0_8 = arith.constant 0 : index
    %9 = vector.load %arg4[%c0_7, %c0_8] : memref<1x128xf32, #tpu.memory_space<vmem>>, vector<1x128xf32>
    %10 = vector.broadcast %9 : vector<1x128xf32> to vector<32x128xf32>
    %11 = arith.addf %8, %10 : vector<32x128xf32>
    %cst_9 = arith.constant 0.000000e+00 : f32
    %12 = vector.broadcast %cst_9 : f32 to vector<32x128xf32>
    %13 = arith.maximumf %11, %12 : vector<32x128xf32>
    %c0_10 = arith.constant 0 : index
    %c0_11 = arith.constant 0 : index
    %14 = vector.load %arg5[%c0_10, %c0_11] : memref<32x128xf32, #tpu.memory_space<vmem>>, vector<32x128xf32>
    tpu.vector_store %arg5[%c0_10, %c0_11], %13 {strides = array<i32>} : memref<32x128xf32, #tpu.memory_space<vmem>>, vector<32x128xf32>,
    return
  }
  func.func @transform_0(%arg0: i32) -> (i32, i32) {
    %c0_i32 = arith.constant 0 : i32
    %c0_i32_0 = arith.constant 0 : i32
    return %arg0, %c0_i32 : i32, i32
  }
  func.func @transform_1(%arg0: i32) -> (i32, i32) {
    %c0_i32 = arith.constant 0 : i32
    %c0_i32_0 = arith.constant 0 : i32
    %c0_i32_1 = arith.constant 0 : i32
    return %c0_i32, %c0_i32_0 : i32, i32
  }
  func.func @transform_2(%arg0: i32) -> (i32, i32) {
    %c0_i32 = arith.constant 0 : i32
    %c0_i32_0 = arith.constant 0 : i32
    %c0_i32_1 = arith.constant 0 : i32
    return %c0_i32, %c0_i32_0 : i32, i32
  }
  func.func @transform_3(%arg0: i32) -> (i32, i32) {
    %c0_i32 = arith.constant 0 : i32
    %c0_i32_0 = arith.constant 0 : i32
    %c0_i32_1 = arith.constant 0 : i32
    return %c0_i32, %c0_i32_0 : i32, i32
  }
  func.func @transform_4(%arg0: i32) -> (i32, i32) {
    %c0_i32 = arith.constant 0 : i32
    %c0_i32_0 = arith.constant 0 : i32
    return %arg0, %c0_i32 : i32, i32
  }
}

</mosaic_0001>

<llo_original>
// kernel: tpu_custom_call.1
$region0: #{tpu_custom_call.1}
  #allocation0 [shape = 'u32[]', space=smem, size = 0x4, offset = 0x4, fixed_abs, tag = 'smem constant byte address 0x4 - core index']
  #allocation1 [shape = 'u32[144,128]{1,0:T(1,128)}', space=vmem, size = 0x12000, scoped, tag = 'internal scratch']
  %s0 = inlined_call_operand.vmem [shape: f32[32,8], index: 0, kind: input, shape index: {}]
  %s1 = inlined_call_operand.vmem [shape: bf16[8,256], index: 1, kind: input, shape index: {}]
  %s2 = inlined_call_operand.hbm [shape: bf16[256,128], index: 2, kind: input, shape index: {}]
  %s3 = inlined_call_operand.vmem [shape: f32[1,128], index: 3, kind: input, shape index: {}]
  %s4 = inlined_call_operand.hbm [shape: f32[32,128], index: 4, kind: output, shape index: {}]
  %s5 = sld [smem:[#allocation0]]
  $region30: #{tpu_custom_call.1} parent=0
    _
  %s7 = ssub.s32 1, %s5
  %s8 = scalar_select 0, %s7, %s5
  $region1: #{tpu_custom_call.1} parent=0
    #allocation2 [shape = 'u8[65536]{0}', space=vmem, size = 0x10000, scoped, tag = 'input window, operand 2, single buffered']
    #allocation3 [shape = 's32[1]{0}', space=sflag, size = 0x4, scoped, tag = 'scoped memory for tpu_custom_call.1']
    #allocation4 [shape = 's32[1]{0}', space=sflag, size = 0x4, scoped, tag = 'scoped memory for tpu_custom_call.1']
    #allocation5 [shape = 'u8[16384]{0}', space=vmem, size = 0x4000, scoped, tag = 'output window, operand 0, single buffered']
    %9 = vsyncpa [#allocation3], 0
    %10 = vsyncpa [#allocation4], 0
    // Predicated region
    $region2: #{tpu_custom_call.1} parent=1 // pred_check
      _
    $region3: #{tpu_custom_call.1} parent=1 // pred_check_branch
      %12 = sbr.rel (0) target = $region5
    $region4: #{tpu_custom_call.1} parent=1 // pred_region
      _
    $region5: #{tpu_custom_call.1} parent=1 // pred_fallthru
      _
    // Predicated region
    $region6: #{tpu_custom_call.1} parent=1 // pred_check
      _
    $region7: #{tpu_custom_call.1} parent=1 // pred_check_branch
      %14 = sbr.rel (0) target = $region9
    $region8: #{tpu_custom_call.1} parent=1 // pred_region
      _
    $region9: #{tpu_custom_call.1} parent=1 // pred_fallthru
      _
    // Predicated region
    $region10: #{tpu_custom_call.1} parent=1 // pred_check
      _
    $region11: #{tpu_custom_call.1} parent=1 // pred_check_branch
      %16 = sbr.rel (0) target = $region13
    $region12: #{tpu_custom_call.1} parent=1 // pred_region
      %s18 = ssub.s32 2048, 2048
      %19 = vsyncadd [#allocation3], %s18
      %s20 = sshll.u32 [#allocation2], 4
      %s21 = int_to_ptr.vmem [resolvable:$true] %s20
      %26 = dma.hbm_to_vmem [thread:$0]  %s2, 2048, %s21, [#allocation3], 64, 64, 4
    $region13: #{tpu_custom_call.1} parent=1 // pred_fallthru
      _
    // Predicated region
    $region14: #{tpu_custom_call.1} parent=1 // pred_check
      _
    $region15: #{tpu_custom_call.1} parent=1 // pred_check_branch
      %28 = sbr.rel (0) target = $region17
    $region16: #{tpu_custom_call.1} parent=1 // pred_region
      _
    $region17: #{tpu_custom_call.1} parent=1 // pred_fallthru
      _
    // Predicated region
    $region18: #{tpu_custom_call.1} parent=1 // pred_check
      _
    $region19: #{tpu_custom_call.1} parent=1 // pred_check_branch
      %30 = sbr.rel (0) target = $region21
    $region20: #{tpu_custom_call.1} parent=1 // pred_region
      %31 = dma.done [#allocation3], 2048
    $region21: #{tpu_custom_call.1} parent=1 // pred_fallthru
      _
    %v33 = vld [vmem:[%s0] sm:$0xff]
    %v34 = vld [vmem:[%s0 + $0x8] sm:$0xff]
    %v35 = vld [vmem:[%s0 + $0x10] sm:$0xff]
    %v36 = vld [vmem:[%s0 + $0x18] sm:$0xff]
    %v37 = vpack.c.bf16 %v34, %v33
    %v38 = vpack.c.bf16 %v36, %v35
    %v39 = vld [vmem:[%s1] sm:$0xff]
    %v41 = vunpack.c.l.b16 %v39
    %v42 = vunpack.c.h.b16 %v39
    %v43 = vpack.c.b16 %v41, %v41
    %v44 = vpack.c.b16 %v42, %v42
    %vm45 = vcmask 64512
    %v47 = vsel %vm45, %v37, 0
    %v50 = vsel %vm45, %v38, 0
    %vm52 = vcmask 1043456
    %v54 = vsel %vm52, %v43, 0
    %v57 = vsel %vm52, %v44, 0
    %59 = vmatprep.subr.bf16.mxu0 0
    %60 = vmatpush1.bf16.msra.mxu0 0
    %61 = vmatprep.subr.bf16.mxu0 0
    %62 = vmatpush1.bf16.msra.mxu0 0
    %63 = vmatprep.subr.bf16.mxu0 0
    %64 = vmatpush1.bf16.msra.mxu0 0
    %65 = vmatprep.subr.bf16.mxu0 0
    %66 = vmatpush1.bf16.msra.mxu0 0
    %67 = vmatprep.subr.bf16.mxu0 0
    %68 = vmatpush1.bf16.msra.mxu0 0
    %69 = vmatprep.subr.bf16.mxu0 0
    %70 = vmatpush1.bf16.msra.mxu0 0
    %71 = vmatprep.subr.bf16.mxu0 0
    %72 = vmatpush1.bf16.msra.mxu0 0
    %73 = vmatprep.subr.bf16.mxu0 %v57
    %74 = vmatpush1.bf16.msra.mxu0 %v54
    %75 = vmatprep.subr.bf16.mxu0 0
    %76 = vmatpush2.bf16.msra.mxu0 0
    %77 = vmatprep.subr.bf16.mxu0 0
    %78 = vmatpush2.bf16.msra.mxu0 0
    %79 = vmatprep.subr.bf16.mxu0 0
    %80 = vmatpush2.bf16.msra.mxu0 0
    %81 = vmatprep.subr.bf16.mxu0 0
    %82 = vmatpush2.bf16.msra.mxu0 0
    %83 = vmatprep.subr.bf16.mxu0 0
    %84 = vmatpush2.bf16.msra.mxu0 0
    %85 = vmatprep.subr.bf16.mxu0 0
    %86 = vmatpush2.bf16.msra.mxu0 0
    %87 = vmatprep.subr.bf16.mxu0 0
    %88 = vmatpush2.bf16.msra.mxu0 0
    %89 = vmatprep.subr.bf16.mxu0 0
    %90 = vmatpush2.bf16.msra.mxu0 0
    %91 = vmatprep.mubr.bf16.mxu0 0
    %92 = vmatmul.mubr.bf16.gmra.mxu0 %v47
    %v93 = vpop.f32.mrf.mxu0
    %v94 = vadd.f32 0.0, %v93
    %v95 = vpop.f32.mrf.mxu0
    %v96 = vadd.f32 0.0, %v95
    %v97 = vpop.f32.mrf.mxu0
    %v98 = vadd.f32 0.0, %v97
    %v99 = vpop.f32.mrf.mxu0
    %v100 = vadd.f32 0.0, %v99
    %101 = vmatprep.mubr.bf16.mxu0 0
    %102 = vmatmul.mubr.bf16.gmra.mxu0 %v50
    %v103 = vpop.f32.mrf.mxu0
    %v104 = vadd.f32 0.0, %v103
    %v105 = vpop.f32.mrf.mxu0
    %v106 = vadd.f32 0.0, %v105
    %v107 = vpop.f32.mrf.mxu0
    %v108 = vadd.f32 0.0, %v107
    %v109 = vpop.f32.mrf.mxu0
    %v110 = vadd.f32 0.0, %v109
    %111 = vdwg.mxu0
    %v112 = vmax.f32 %v94, 0.0
    %v113 = vmax.f32 %v96, 0.0
    %v114 = vmax.f32 %v98, 0.0
    %v115 = vmax.f32 %v100, 0.0
    %v116 = vmax.f32 %v104, 0.0
    %v117 = vmax.f32 %v106, 0.0
    %v118 = vmax.f32 %v108, 0.0
    %v119 = vmax.f32 %v110, 0.0
    %v120 = vpack.c.bf16 %v114, %v112
    %v121 = vpack.c.bf16 %v115, %v113
    %v122 = vpack.c.bf16 %v118, %v116
    %v123 = vpack.c.bf16 %v119, %v117
    %v124 = vld [vmem:[#allocation2] sm:$0xf]
    %v125 = vld [vmem:[#allocation2 + $0x4] sm:$0xf]
    %v126 = vld [vmem:[#allocation2 + $0x8] sm:$0xf]
    %v127 = vld [vmem:[#allocation2 + $0xc] sm:$0xf]
    %v128 = vld [vmem:[#allocation2 + $0x10] sm:$0xf]
    %v129 = vld [vmem:[#allocation2 + $0x14] sm:$0xf]
    %v130 = vld [vmem:[#allocation2 + $0x18] sm:$0xf]
    %v131 = vld [vmem:[#allocation2 + $0x1c] sm:$0xf]
    %v132 = vld [vmem:[#allocation2 + $0x20] sm:$0xf]
    %v133 = vld [vmem:[#allocation2 + $0x24] sm:$0xf]
    %v134 = vld [vmem:[#allocation2 + $0x28] sm:$0xf]
    %v135 = vld [vmem:[#allocation2 + $0x2c] sm:$0xf]
    %v136 = vld [vmem:[#allocation2 + $0x30] sm:$0xf]
    %v137 = vld [vmem:[#allocation2 + $0x34] sm:$0xf]
    %v138 = vld [vmem:[#allocation2 + $0x38] sm:$0xf]
    %v139 = vld [vmem:[#allocation2 + $0x3c] sm:$0xf]
    %v140 = vld [vmem:[#allocation2 + $0x40] sm:$0xf]
    %v141 = vld [vmem:[#allocation2 + $0x44] sm:$0xf]
    %v142 = vld [vmem:[#allocation2 + $0x48] sm:$0xf]
    %v143 = vld [vmem:[#allocation2 + $0x4c] sm:$0xf]
    %v144 = vld [vmem:[#allocation2 + $0x50] sm:$0xf]
    %v145 = vld [vmem:[#allocation2 + $0x54] sm:$0xf]
    %v146 = vld [vmem:[#allocation2 + $0x58] sm:$0xf]
    %v147 = vld [vmem:[#allocation2 + $0x5c] sm:$0xf]
    %v148 = vld [vmem:[#allocation2 + $0x60] sm:$0xf]
    %v149 = vld [vmem:[#allocation2 + $0x64] sm:$0xf]
    %v150 = vld [vmem:[#allocation2 + $0x68] sm:$0xf]
    %v151 = vld [vmem:[#allocation2 + $0x6c] sm:$0xf]
    %v152 = vld [vmem:[#allocation2 + $0x70] sm:$0xf]
    %v153 = vld [vmem:[#allocation2 + $0x74] sm:$0xf]
    %v154 = vld [vmem:[#allocation2 + $0x78] sm:$0xf]
    %v155 = vld [vmem:[#allocation2 + $0x7c] sm:$0xf]
    %v156 = vld [vmem:[%s3] sm:$0x1]
    %v158 = vlaneseq
    %v159 = vshrl.u32 %v158, 7
    %v160 = vsub.s32 0, %v159
    %v161 = vrot.slane %v156, %v160
    %v195 = vunpack.c.l.b16 %v124
    %v196 = vunpack.c.l.b16 %v125
    %v197 = vunpack.c.l.b16 %v126
    %v198 = vunpack.c.l.b16 %v127
    %v199 = vunpack.c.l.b16 %v128
    %v200 = vunpack.c.l.b16 %v129
    %v201 = vunpack.c.l.b16 %v130
    %v202 = vunpack.c.l.b16 %v131
    %v203 = vunpack.c.l.b16 %v132
    %v204 = vunpack.c.l.b16 %v133
    %v205 = vunpack.c.l.b16 %v134
    %v206 = vunpack.c.l.b16 %v135
    %v207 = vunpack.c.l.b16 %v136
    %v208 = vunpack.c.l.b16 %v137
    %v209 = vunpack.c.l.b16 %v138
    %v210 = vunpack.c.l.b16 %v139
    %v211 = vunpack.c.l.b16 %v140
    %v212 = vunpack.c.l.b16 %v141
    %v213 = vunpack.c.l.b16 %v142
    %v214 = vunpack.c.l.b16 %v143
    %v215 = vunpack.c.l.b16 %v144
    %v216 = vunpack.c.l.b16 %v145
    %v217 = vunpack.c.l.b16 %v146
    %v218 = vunpack.c.l.b16 %v147
    %v219 = vunpack.c.l.b16 %v148
    %v220 = vunpack.c.l.b16 %v149
    %v221 = vunpack.c.l.b16 %v150
    %v222 = vunpack.c.l.b16 %v151
    %v223 = vunpack.c.l.b16 %v152
    %v224 = vunpack.c.l.b16 %v153
    %v225 = vunpack.c.l.b16 %v154
    %v226 = vunpack.c.l.b16 %v155
    %v227 = vpack.c.b16 %v196, %v195
    %v228 = vpack.c.b16 %v198, %v197
    %v229 = vpack.c.b16 %v200, %v199
    %v230 = vpack.c.b16 %v202, %v201
    %v231 = vpack.c.b16 %v204, %v203
    %v232 = vpack.c.b16 %v206, %v205
    %v233 = vpack.c.b16 %v208, %v207
    %v234 = vpack.c.b16 %v210, %v209
    %v235 = vpack.c.b16 %v212, %v211
    %v236 = vpack.c.b16 %v214, %v213
    %v237 = vpack.c.b16 %v216, %v215
    %v238 = vpack.c.b16 %v218, %v217
    %v239 = vpack.c.b16 %v220, %v219
    %v240 = vpack.c.b16 %v222, %v221
    %v241 = vpack.c.b16 %v224, %v223
    %v242 = vpack.c.b16 %v226, %v225
    %259 = vmatprep.subr.bf16.mxu0 0
    %260 = vmatpush1.bf16.msra.mxu0 %v234
    %261 = vmatprep.subr.bf16.mxu0 0
    %262 = vmatpush1.bf16.msra.mxu0 %v233
    %263 = vmatprep.subr.bf16.mxu0 0
    %264 = vmatpush1.bf16.msra.mxu0 %v232
    %265 = vmatprep.subr.bf16.mxu0 0
    %266 = vmatpush1.bf16.msra.mxu0 %v231
    %267 = vmatprep.subr.bf16.mxu0 0
    %268 = vmatpush1.bf16.msra.mxu0 %v230
    %269 = vmatprep.subr.bf16.mxu0 0
    %270 = vmatpush1.bf16.msra.mxu0 %v229
    %271 = vmatprep.subr.bf16.mxu0 0
    %272 = vmatpush1.bf16.msra.mxu0 %v228
    %273 = vmatprep.subr.bf16.mxu0 0
    %274 = vmatpush1.bf16.msra.mxu0 %v227
    %275 = vmatprep.subr.bf16.mxu0 0
    %276 = vmatpush2.bf16.msra.mxu0 %v242
    %277 = vmatprep.subr.bf16.mxu0 0
    %278 = vmatpush2.bf16.msra.mxu0 %v241
    %279 = vmatprep.subr.bf16.mxu0 0
    %280 = vmatpush2.bf16.msra.mxu0 %v240
    %281 = vmatprep.subr.bf16.mxu0 0
    %282 = vmatpush2.bf16.msra.mxu0 %v239
    %283 = vmatprep.subr.bf16.mxu0 0
    %284 = vmatpush2.bf16.msra.mxu0 %v238
    %285 = vmatprep.subr.bf16.mxu0 0
    %286 = vmatpush2.bf16.msra.mxu0 %v237
    %287 = vmatprep.subr.bf16.mxu0 0
    %288 = vmatpush2.bf16.msra.mxu0 %v236
    %289 = vmatprep.subr.bf16.mxu0 0
    %290 = vmatpush2.bf16.msra.mxu0 %v235
    %291 = vmatprep.mubr.bf16.mxu0 %v121
    %292 = vmatmul.mubr.bf16.gmra.mxu0 %v120
    %v293 = vpop.f32.mrf.mxu0
    %v294 = vadd.f32 %v161, %v293
    %v295 = vpop.f32.mrf.mxu0
    %v296 = vpop.f32.mrf.mxu0
    %v297 = vadd.f32 %v161, %v296
    %v298 = vpop.f32.mrf.mxu0
    %299 = vmatprep.mubr.bf16.mxu0 %v123
    %300 = vmatmul.mubr.bf16.gmra.mxu0 %v122
    %v301 = vpop.f32.mrf.mxu0
    %v302 = vadd.f32 %v161, %v301
    %v303 = vpop.f32.mrf.mxu0
    %v304 = vpop.f32.mrf.mxu0
    %v305 = vadd.f32 %v161, %v304
    %v306 = vpop.f32.mrf.mxu0
    %307 = vdwg.mxu0
    %v308 = vmax.f32 %v294, 0.0
    %v309 = vmax.f32 %v297, 0.0
    %v310 = vmax.f32 %v302, 0.0
    %v311 = vmax.f32 %v305, 0.0
    %312 = vst [vmem:[#allocation5] sm:$0xff] %v308
    %313 = vst [vmem:[#allocation5 + $0x8] sm:$0xff] %v309
    %314 = vst [vmem:[#allocation5 + $0x10] sm:$0xff] %v310
    %315 = vst [vmem:[#allocation5 + $0x18] sm:$0xff] %v311
    // Predicated region
    $region22: #{tpu_custom_call.1} parent=1 // pred_check
      _
    $region23: #{tpu_custom_call.1} parent=1 // pred_check_branch
      %317 = sbr.rel (0) target = $region25
    $region24: #{tpu_custom_call.1} parent=1 // pred_region
      %s319 = ssub.s32 512, 512
      %320 = vsyncadd [#allocation4], %s319
      %s321 = sshll.u32 [#allocation5], 4
      %s322 = int_to_ptr.vmem [resolvable:$true] %s321
      %327 = dma.vmem_to_hbm [thread:$0]  %s322, 512, %s4, [#allocation4], 128, 128, 8
    $region25: #{tpu_custom_call.1} parent=1 // pred_fallthru
      _
    // Predicated region
    $region26: #{tpu_custom_call.1} parent=1 // pred_check
      _
    $region27: #{tpu_custom_call.1} parent=1 // pred_check_branch
      %329 = sbr.rel (0) target = $region29
    $region28: #{tpu_custom_call.1} parent=1 // pred_region
      %330 = dma.done [#allocation4], 512
    $region29: #{tpu_custom_call.1} parent=1 // pred_fallthru
      _
    %331 = vsyncpa [#allocation3], 1
    %332 = vsyncpa [#allocation4], 1

</llo_original>
